<compile_context>
chip_gen: v7x
topology: tpu7x:2x2x1
jax: 0.10.0
libtpu: 0.0.40
codegen_flags: <defaults>
</compile_context>

<pallas_src>
import functools

import jax
import jax.numpy as jnp
from jax.experimental import pallas as pl
from jax.experimental.pallas import tpu as pltpu

HIDDEN_DIM = 100      # true hidden width of the module
HIDDEN_PAD = 128      # lane-padded hidden width used inside the kernel
LEAKY_SLOPE = 0.01    # nn.LeakyReLU default
LN_EPS = 1e-5         # nn.LayerNorm default
NEG_BIG = -1e30       # fill for padded policy-bias lanes (finite, NOT -inf)


def _round_up(n, m):
    return (n + m - 1) // m * m


def _leaky_relu(x):
    return jnp.where(x > 0, x, LEAKY_SLOPE * x)


def _layer_norm_padded(h, gamma, beta, n_true):
    """Single-pass LayerNorm over lane-padded rows.

    `h` has HIDDEN_PAD lanes but only the first `n_true` are real (padded
    lanes are exactly zero), so sums over all lanes equal sums over the real
    ones; divide by `n_true`.  Padded gamma/beta are zero, so padded output
    lanes stay zero.  (Single-pass E[x^2]-E[x]^2 is fine in f32 at
    post-LeakyReLU magnitudes and the 2e-4 test tolerance.)
    """
    inv_n = 1.0 / n_true
    s = jnp.sum(h, axis=-1, keepdims=True)
    sq = jnp.sum(h * h, axis=-1, keepdims=True)
    mean = s * inv_n
    var = sq * inv_n - mean * mean
    inv = jax.lax.rsqrt(var + LN_EPS)
    return (h - mean) * inv * gamma + beta


def actor_kernel(x_ref, slab_ref, out_ref, *, ip_dim, hidden, r_w2, r_wpi, r_vec):
    x = x_ref[...]                                   # [B, ip_dim], f32

    # Static, 8-aligned views into the single packed parameter slab
    # (no tile-boundary crossings -> no hidden VMEM copies).
    w1 = slab_ref[0:ip_dim, :]                       # [ip_dim, 128]
    w2 = slab_ref[r_w2:r_w2 + HIDDEN_PAD, :]         # [128, 128]
    wpi = slab_ref[r_wpi:r_wpi + HIDDEN_PAD, :]      # [128, 128]  lane-dense head
    vecs = slab_ref[r_vec:r_vec + 8, :]              # [8, 128] packed vector params
    b1, g1, be1 = vecs[0:1, :], vecs[1:2, :], vecs[2:3, :]
    b2, g2, be2 = vecs[3:4, :], vecs[4:5, :], vecs[5:6, :]
    bpi = vecs[6:7, :]                               # padded lanes hold NEG_BIG

    # --- layer 1: linear -> leaky relu -> layernorm ---
    h = jnp.dot(x, w1, preferred_element_type=jnp.float32) + b1
    h = _leaky_relu(h)
    h = _layer_norm_padded(h, g1, be1, hidden)

    # --- layer 2: linear -> leaky relu -> layernorm ---
    h = jnp.dot(h, w2, preferred_element_type=jnp.float32) + b2
    h = _leaky_relu(h)
    h = _layer_norm_padded(h, g2, be2, hidden)

    # --- policy head + log-softmax over 128 lane-dense logits ---
    # Padded logits are exactly NEG_BIG (zero weight columns + NEG_BIG bias):
    # they never win the max and contribute exp(-huge) = 0 to the sum.
    logits = jnp.dot(h, wpi, preferred_element_type=jnp.float32) + bpi
    m = jnp.max(logits, axis=-1, keepdims=True)
    lse = m + jnp.log(jnp.sum(jnp.exp(logits - m), axis=-1, keepdims=True))

    out_ref[0] = logits                              # merged output: [2, B, 128]
    out_ref[1] = logits - lse


def pack_params(params, h_pad=HIDDEN_PAD):
    """One-time packing of ALL parameters into a single [n_rows, 128] f32 slab.

    Weights are transposed to [in, out] and zero-padded (hidden 100 -> 128,
    policy outputs num_action -> 128).  Padded policy-bias lanes are NEG_BIG.
    """
    hidden, ip_dim = params["w1"].shape              # torch Linear: W is [out, in]
    na = params["w_pi"].shape[0]
    f32 = jnp.float32

    r_w2 = _round_up(ip_dim, 8)
    r_wpi = r_w2 + h_pad
    r_vec = r_wpi + h_pad
    n_rows = r_vec + 8

    slab = jnp.zeros((n_rows, h_pad), f32)
    slab = slab.at[0:ip_dim, :hidden].set(params["w1"].T.astype(f32))
    slab = slab.at[r_w2:r_w2 + hidden, :hidden].set(params["w2"].T.astype(f32))
    slab = slab.at[r_wpi:r_wpi + hidden, :na].set(params["w_pi"].T.astype(f32))
    slab = slab.at[r_vec + 0, :hidden].set(params["b1"].astype(f32))
    slab = slab.at[r_vec + 1, :hidden].set(params["ln1_g"].astype(f32))
    slab = slab.at[r_vec + 2, :hidden].set(params["ln1_b"].astype(f32))
    slab = slab.at[r_vec + 3, :hidden].set(params["b2"].astype(f32))
    slab = slab.at[r_vec + 4, :hidden].set(params["ln2_g"].astype(f32))
    slab = slab.at[r_vec + 5, :hidden].set(params["ln2_b"].astype(f32))
    slab = slab.at[r_vec + 6, :].set(jnp.full((h_pad,), NEG_BIG, f32))
    slab = slab.at[r_vec + 6, :na].set(params["b_pi"].astype(f32))
    return slab


@functools.partial(jax.jit, static_argnames=("num_action",))
def actor_nw_forward(x, slab, *, num_action):
    """x: [batch, ip_dim] float32. slab: output of pack_params(). num_action static."""
    batch, ip_dim = x.shape
    h_pad = HIDDEN_PAD
    r_w2 = _round_up(ip_dim, 8)
    r_wpi = r_w2 + h_pad
    r_vec = r_wpi + h_pad

    kernel = functools.partial(actor_kernel, ip_dim=ip_dim, hidden=HIDDEN_DIM,
                               r_w2=r_w2, r_wpi=r_wpi, r_vec=r_vec)
    vmem = pl.BlockSpec(memory_space=pltpu.MemorySpace.VMEM)

    flops = 2 * batch * (ip_dim * h_pad + h_pad * h_pad + h_pad * h_pad) \
        + 12 * batch * h_pad
    bytes_accessed = (x.size + slab.size + 2 * batch * h_pad) * 4
    transcendentals = batch * (h_pad + 3)

    out = pl.pallas_call(
        kernel,
        out_shape=jax.ShapeDtypeStruct((2, batch, h_pad), jnp.float32),
        in_specs=[vmem, vmem],
        out_specs=vmem,
        cost_estimate=pl.CostEstimate(flops=flops,
                                      transcendentals=transcendentals,
                                      bytes_accessed=bytes_accessed),
    )(x, slab)
    # Lane-dense (2, B, 128) kernel output; discard padded action lanes here.
    return out[0, :, :num_action], out[1, :, :num_action]


def init_params(key, ip_dim, num_action, hidden=HIDDEN_DIM):
    """Deterministic synthetic init (PyTorch Linear shapes: W is [out, in])."""
    ks = jax.random.split(key, 6)
    scale1 = 1.0 / jnp.sqrt(ip_dim)
    scale2 = 1.0 / jnp.sqrt(hidden)
    return {
        "w1": jax.random.uniform(ks[0], (hidden, ip_dim), jnp.float32, -scale1, scale1),
        "b1": jax.random.uniform(ks[1], (hidden,), jnp.float32, -scale1, scale1),
        "ln1_g": jnp.ones((hidden,), jnp.float32),
        "ln1_b": jnp.zeros((hidden,), jnp.float32),
        "w2": jax.random.uniform(ks[2], (hidden, hidden), jnp.float32, -scale2, scale2),
        "b2": jax.random.uniform(ks[3], (hidden,), jnp.float32, -scale2, scale2),
        "ln2_g": jnp.ones((hidden,), jnp.float32),
        "ln2_b": jnp.zeros((hidden,), jnp.float32),
        "w_pi": jax.random.uniform(ks[4], (num_action, hidden), jnp.float32, -scale2, scale2),
        "b_pi": jax.random.uniform(ks[5], (num_action,), jnp.float32, -scale2, scale2),
    }


def _reference_forward(x, p):
    """Pure-JAX reference mirroring the PyTorch module (unpadded params)."""
    def ln(h, g, b):
        mu = jnp.mean(h, -1, keepdims=True)
        var = jnp.mean((h - mu) ** 2, -1, keepdims=True)
        return (h - mu) / jnp.sqrt(var + LN_EPS) * g + b

    h = x @ p["w1"].T + p["b1"]
    h = jnp.where(h > 0, h, LEAKY_SLOPE * h)
    h = ln(h, p["ln1_g"], p["ln1_b"])
    h = h @ p["w2"].T + p["b2"]
    h = jnp.where(h > 0, h, LEAKY_SLOPE * h)
    h = ln(h, p["ln2_g"], p["ln2_b"])
    logits = h @ p["w_pi"].T + p["b_pi"]
    lsm = logits - jax.scipy.special.logsumexp(logits, axis=-1, keepdims=True)
    return logits, lsm


if __name__ == "__main__":
    key = jax.random.PRNGKey(0)
    k_x, k_p = jax.random.split(key)

    batch, ip_dim, num_action = 8, 32, 16
    x = jax.random.normal(k_x, (batch, ip_dim), jnp.float32)
    params = init_params(k_p, ip_dim, num_action)

    slab = pack_params(params)                       # one-time packing
    slab = jax.block_until_ready(slab)

    pi_logit, lg_sm = actor_nw_forward(x, slab, num_action=num_action)
    pi_logit, lg_sm = jax.block_until_ready((pi_logit, lg_sm))

    ref_logit, ref_lsm = _reference_forward(x, params)
    assert pi_logit.shape == (batch, num_action) and lg_sm.shape == (batch, num_action)
    assert jnp.allclose(pi_logit, ref_logit, atol=2e-4, rtol=2e-4)
    assert jnp.allclose(lg_sm, ref_lsm, atol=2e-4, rtol=2e-4)
    assert bool(jnp.all(jnp.isfinite(lg_sm)))

    print("KERNEL_OK")
</pallas_src>

<mosaic_0001>
module attributes {stable_mosaic.version = 11 : i64} {
  func.func @actor_kernel(%arg0: memref<8x32xf32, #tpu.memory_space<vmem>>, %arg1: memref<296x128xf32, #tpu.memory_space<vmem>>, %arg2: memref<2x8x128xf32, #tpu.memory_space<vmem>>) attributes {dimension_semantics = [], scalar_prefetch = 0 : i64, scratch_operands = 0 : i64, tpu.core_type = #tpu.core_type<tc>} {
    %c0 = arith.constant 0 : index
    %c0_0 = arith.constant 0 : index
    %0 = vector.load %arg0[%c0, %c0_0] : memref<8x32xf32, #tpu.memory_space<vmem>>, vector<8x32xf32>
    %c0_1 = arith.constant 0 : index
    %c0_2 = arith.constant 0 : index
    %1 = vector.load %arg1[%c0_1, %c0_2] : memref<296x128xf32, #tpu.memory_space<vmem>>, vector<32x128xf32>
    %c32 = arith.constant 32 : index
    %c0_3 = arith.constant 0 : index
    %2 = vector.load %arg1[%c32, %c0_3] : memref<296x128xf32, #tpu.memory_space<vmem>>, vector<128x128xf32>
    %c160 = arith.constant 160 : index
    %c0_4 = arith.constant 0 : index
    %3 = vector.load %arg1[%c160, %c0_4] : memref<296x128xf32, #tpu.memory_space<vmem>>, vector<128x128xf32>
    %c288 = arith.constant 288 : index
    %c0_5 = arith.constant 0 : index
    %4 = vector.load %arg1[%c288, %c0_5] : memref<296x128xf32, #tpu.memory_space<vmem>>, vector<8x128xf32>
    %5 = vector.extract_strided_slice %4 {offsets = [0, 0], sizes = [1, 128], strides = [1, 1]} : vector<8x128xf32> to vector<1x128xf32>
    %6 = vector.extract_strided_slice %4 {offsets = [1, 0], sizes = [1, 128], strides = [1, 1]} : vector<8x128xf32> to vector<1x128xf32>
    %7 = vector.extract_strided_slice %4 {offsets = [2, 0], sizes = [1, 128], strides = [1, 1]} : vector<8x128xf32> to vector<1x128xf32>
    %8 = vector.extract_strided_slice %4 {offsets = [3, 0], sizes = [1, 128], strides = [1, 1]} : vector<8x128xf32> to vector<1x128xf32>
    %9 = vector.extract_strided_slice %4 {offsets = [4, 0], sizes = [1, 128], strides = [1, 1]} : vector<8x128xf32> to vector<1x128xf32>
    %10 = vector.extract_strided_slice %4 {offsets = [5, 0], sizes = [1, 128], strides = [1, 1]} : vector<8x128xf32> to vector<1x128xf32>
    %11 = vector.extract_strided_slice %4 {offsets = [6, 0], sizes = [1, 128], strides = [1, 1]} : vector<8x128xf32> to vector<1x128xf32>
    %cst = arith.constant dense<0.000000e+00> : vector<8x128xf32>
    %12 = tpu.matmul %0, %1, %cst {dimension_numbers = #tpu.dot_dimension_numbers<[1], [0], [0], [1], [0, 0, 1, 1], [], []>} : vector<8x32xf32>, vector<32x128xf32>, vector<8x128xf32> -> vector<8x128xf32>
    %13 = vector.broadcast %5 : vector<1x128xf32> to vector<8x128xf32>
    %14 = arith.addf %12, %13 : vector<8x128xf32>
    %cst_6 = arith.constant 0.000000e+00 : f32
    %15 = vector.broadcast %cst_6 : f32 to vector<8x128xf32>
    %16 = arith.cmpf ogt, %14, %15 : vector<8x128xf32>
    %cst_7 = arith.constant 0.00999999977 : f32
    %17 = vector.broadcast %cst_7 : f32 to vector<8x128xf32>
    %18 = arith.mulf %17, %14 : vector<8x128xf32>
    %19 = arith.select %16, %14, %18 : vector<8x128xi1>, vector<8x128xf32>
    %cst_8 = arith.constant dense<0.000000e+00> : vector<8xf32>
    %20 = vector.multi_reduction <add>, %19, %cst_8 [1] : vector<8x128xf32> to vector<8xf32>
    %21 = vector.shape_cast %20 : vector<8xf32> to vector<8x1xf32>
    %22 = arith.mulf %19, %19 : vector<8x128xf32>
    %cst_9 = arith.constant dense<0.000000e+00> : vector<8xf32>
    %23 = vector.multi_reduction <add>, %22, %cst_9 [1] : vector<8x128xf32> to vector<8xf32>
    %24 = vector.shape_cast %23 : vector<8xf32> to vector<8x1xf32>
    %cst_10 = arith.constant 0.00999999977 : f32
    %25 = vector.broadcast %cst_10 : f32 to vector<8x1xf32>
    %26 = arith.mulf %21, %25 : vector<8x1xf32>
    %cst_11 = arith.constant 0.00999999977 : f32
    %27 = vector.broadcast %cst_11 : f32 to vector<8x1xf32>
    %28 = arith.mulf %24, %27 : vector<8x1xf32>
    %29 = arith.mulf %26, %26 : vector<8x1xf32>
    %30 = arith.subf %28, %29 : vector<8x1xf32>
    %cst_12 = arith.constant 9.99999974E-6 : f32
    %31 = vector.broadcast %cst_12 : f32 to vector<8x1xf32>
    %32 = arith.addf %30, %31 : vector<8x1xf32>
    %33 = math.rsqrt %32 : vector<8x1xf32>
    %34 = vector.broadcast %26 : vector<8x1xf32> to vector<8x128xf32>
    %35 = arith.subf %19, %34 : vector<8x128xf32>
    %36 = vector.broadcast %33 : vector<8x1xf32> to vector<8x128xf32>
    %37 = arith.mulf %35, %36 : vector<8x128xf32>
    %38 = vector.broadcast %6 : vector<1x128xf32> to vector<8x128xf32>
    %39 = arith.mulf %37, %38 : vector<8x128xf32>
    %40 = vector.broadcast %7 : vector<1x128xf32> to vector<8x128xf32>
    %41 = arith.addf %39, %40 : vector<8x128xf32>
    %cst_13 = arith.constant dense<0.000000e+00> : vector<8x128xf32>
    %42 = tpu.matmul %41, %2, %cst_13 {dimension_numbers = #tpu.dot_dimension_numbers<[1], [0], [0], [1], [0, 0, 1, 1], [], []>} : vector<8x128xf32>, vector<128x128xf32>, vector<8x128xf32> -> vector<8x128xf32>
    %43 = vector.broadcast %8 : vector<1x128xf32> to vector<8x128xf32>
    %44 = arith.addf %42, %43 : vector<8x128xf32>
    %cst_14 = arith.constant 0.000000e+00 : f32
    %45 = vector.broadcast %cst_14 : f32 to vector<8x128xf32>
    %46 = arith.cmpf ogt, %44, %45 : vector<8x128xf32>
    %cst_15 = arith.constant 0.00999999977 : f32
    %47 = vector.broadcast %cst_15 : f32 to vector<8x128xf32>
    %48 = arith.mulf %47, %44 : vector<8x128xf32>
    %49 = arith.select %46, %44, %48 : vector<8x128xi1>, vector<8x128xf32>
    %cst_16 = arith.constant dense<0.000000e+00> : vector<8xf32>
    %50 = vector.multi_reduction <add>, %49, %cst_16 [1] : vector<8x128xf32> to vector<8xf32>
    %51 = vector.shape_cast %50 : vector<8xf32> to vector<8x1xf32>
    %52 = arith.mulf %49, %49 : vector<8x128xf32>
    %cst_17 = arith.constant dense<0.000000e+00> : vector<8xf32>
    %53 = vector.multi_reduction <add>, %52, %cst_17 [1] : vector<8x128xf32> to vector<8xf32>
    %54 = vector.shape_cast %53 : vector<8xf32> to vector<8x1xf32>
    %cst_18 = arith.constant 0.00999999977 : f32
    %55 = vector.broadcast %cst_18 : f32 to vector<8x1xf32>
    %56 = arith.mulf %51, %55 : vector<8x1xf32>
    %cst_19 = arith.constant 0.00999999977 : f32
    %57 = vector.broadcast %cst_19 : f32 to vector<8x1xf32>
    %58 = arith.mulf %54, %57 : vector<8x1xf32>
    %59 = arith.mulf %56, %56 : vector<8x1xf32>
    %60 = arith.subf %58, %59 : vector<8x1xf32>
    %cst_20 = arith.constant 9.99999974E-6 : f32
    %61 = vector.broadcast %cst_20 : f32 to vector<8x1xf32>
    %62 = arith.addf %60, %61 : vector<8x1xf32>
    %63 = math.rsqrt %62 : vector<8x1xf32>
    %64 = vector.broadcast %56 : vector<8x1xf32> to vector<8x128xf32>
    %65 = arith.subf %49, %64 : vector<8x128xf32>
    %66 = vector.broadcast %63 : vector<8x1xf32> to vector<8x128xf32>
    %67 = arith.mulf %65, %66 : vector<8x128xf32>
    %68 = vector.broadcast %9 : vector<1x128xf32> to vector<8x128xf32>
    %69 = arith.mulf %67, %68 : vector<8x128xf32>
    %70 = vector.broadcast %10 : vector<1x128xf32> to vector<8x128xf32>
    %71 = arith.addf %69, %70 : vector<8x128xf32>
    %cst_21 = arith.constant dense<0.000000e+00> : vector<8x128xf32>
    %72 = tpu.matmul %71, %3, %cst_21 {dimension_numbers = #tpu.dot_dimension_numbers<[1], [0], [0], [1], [0, 0, 1, 1], [], []>} : vector<8x128xf32>, vector<128x128xf32>, vector<8x128xf32> -> vector<8x128xf32>
    %73 = vector.broadcast %11 : vector<1x128xf32> to vector<8x128xf32>
    %74 = arith.addf %72, %73 : vector<8x128xf32>
    %cst_22 = arith.constant dense<0xFF800000> : vector<8xf32>
    %75 = vector.multi_reduction <maximumf>, %74, %cst_22 [1] : vector<8x128xf32> to vector<8xf32>
    %76 = vector.shape_cast %75 : vector<8xf32> to vector<8x1xf32>
    %77 = vector.broadcast %76 : vector<8x1xf32> to vector<8x128xf32>
    %78 = arith.subf %74, %77 : vector<8x128xf32>
    %79 = math.exp %78 : vector<8x128xf32>
    %cst_23 = arith.constant dense<0.000000e+00> : vector<8xf32>
    %80 = vector.multi_reduction <add>, %79, %cst_23 [1] : vector<8x128xf32> to vector<8xf32>
    %81 = vector.shape_cast %80 : vector<8xf32> to vector<8x1xf32>
    %82 = math.log %81 : vector<8x1xf32>
    %83 = arith.addf %76, %82 : vector<8x1xf32>
    %c0_24 = arith.constant 0 : index
    %c0_25 = arith.constant 0 : index
    %c0_26 = arith.constant 0 : index
    %84 = vector.load %arg2[%c0_24, %c0_25, %c0_26] : memref<2x8x128xf32, #tpu.memory_space<vmem>>, vector<1x8x128xf32>
    %85 = vector.shape_cast %84 : vector<1x8x128xf32> to vector<8x128xf32>
    %86 = vector.shape_cast %74 : vector<8x128xf32> to vector<1x8x128xf32>
    tpu.vector_store %arg2[%c0_24, %c0_25, %c0_26], %86 {strides = array<i32>} : memref<2x8x128xf32, #tpu.memory_space<vmem>>, vector<1x8x128xf32>,
    %87 = vector.broadcast %83 : vector<8x1xf32> to vector<8x128xf32>
    %88 = arith.subf %74, %87 : vector<8x128xf32>
    %c1 = arith.constant 1 : index
    %c0_27 = arith.constant 0 : index
    %c0_28 = arith.constant 0 : index
    %89 = vector.load %arg2[%c1, %c0_27, %c0_28] : memref<2x8x128xf32, #tpu.memory_space<vmem>>, vector<1x8x128xf32>
    %90 = vector.shape_cast %89 : vector<1x8x128xf32> to vector<8x128xf32>
    %91 = vector.shape_cast %88 : vector<8x128xf32> to vector<1x8x128xf32>
    tpu.vector_store %arg2[%c1, %c0_27, %c0_28], %91 {strides = array<i32>} : memref<2x8x128xf32, #tpu.memory_space<vmem>>, vector<1x8x128xf32>,
    return
  }
}

</mosaic_0001>

<llo_original>
// kernel: actor_nw_forward.1
$region0: #{actor_nw_forward.1}
  #allocation0 [shape = 'u32[]', space=smem, size = 0x4, offset = 0x4, fixed_abs, tag = 'smem constant byte address 0x4 - core index']
  #allocation1 [shape = 'u32[144,128]{1,0:T(1,128)}', space=vmem, size = 0x12000, scoped, tag = 'internal scratch']
  %s0 = inlined_call_operand.hbm [shape: f32[8,32], index: 0, kind: input, shape index: {}]
  %s1 = inlined_call_operand.hbm [shape: f32[296,128], index: 1, kind: input, shape index: {}]
  %s2 = inlined_call_operand.vmem [shape: f32[2,8,128], index: 2, kind: output, shape index: {}]
  %s3 = sld [smem:[#allocation0]]
  $region26: #{actor_nw_forward.1} parent=0
    _
  %s5 = ssub.s32 1, %s3
  %s6 = scalar_select 0, %s5, %s3
  $region1: #{actor_nw_forward.1} parent=0
    #allocation2 [shape = 'u8[4096]{0}', space=vmem, size = 0x1000, scoped, tag = 'input window, operand 0, single buffered']
    #allocation3 [shape = 's32[1]{0}', space=sflag, size = 0x4, scoped, tag = 'scoped memory for actor_nw_forward.1']
    #allocation4 [shape = 'u8[151552]{0}', space=vmem, size = 0x25000, scoped, tag = 'input window, operand 1, single buffered']
    #allocation5 [shape = 's32[1]{0}', space=sflag, size = 0x4, scoped, tag = 'scoped memory for actor_nw_forward.1']
    %7 = vsyncpa [#allocation3], 0
    %8 = vsyncpa [#allocation5], 0
    // Predicated region
    $region2: #{actor_nw_forward.1} parent=1 // pred_check
      _
    $region3: #{actor_nw_forward.1} parent=1 // pred_check_branch
      %10 = sbr.rel (0) target = $region5
    $region4: #{actor_nw_forward.1} parent=1 // pred_region
      %s12 = ssub.s32 128, 128
      %13 = vsyncadd [#allocation3], %s12
      %s15 = sshll.u32 [#allocation2], 4
      %s16 = int_to_ptr.vmem [resolvable:$true] %s15
      %18 = dma.hbm_to_vmem [thread:$0]  %s0, 128, %s16, [#allocation3]
    $region5: #{actor_nw_forward.1} parent=1 // pred_fallthru
      _
    // Predicated region
    $region6: #{actor_nw_forward.1} parent=1 // pred_check
      _
    $region7: #{actor_nw_forward.1} parent=1 // pred_check_branch
      %20 = sbr.rel (0) target = $region9
    $region8: #{actor_nw_forward.1} parent=1 // pred_region
      %s22 = ssub.s32 4736, 4736
      %23 = vsyncadd [#allocation5], %s22
      %s24 = sshll.u32 [#allocation4], 4
      %s25 = int_to_ptr.vmem [resolvable:$true] %s24
      %30 = dma.hbm_to_vmem [thread:$0]  %s1, 4736, %s25, [#allocation5], 128, 128, 8
    $region9: #{actor_nw_forward.1} parent=1 // pred_fallthru
      _
    // Predicated region
    $region10: #{actor_nw_forward.1} parent=1 // pred_check
      _
    $region11: #{actor_nw_forward.1} parent=1 // pred_check_branch
      %32 = sbr.rel (0) target = $region13
    $region12: #{actor_nw_forward.1} parent=1 // pred_region
      %33 = dma.done [#allocation3], 128
    $region13: #{actor_nw_forward.1} parent=1 // pred_fallthru
      _
    // Predicated region
    $region14: #{actor_nw_forward.1} parent=1 // pred_check
      _
    $region15: #{actor_nw_forward.1} parent=1 // pred_check_branch
      %35 = sbr.rel (0) target = $region17
    $region16: #{actor_nw_forward.1} parent=1 // pred_region
      %36 = dma.done [#allocation5], 4736
    $region17: #{actor_nw_forward.1} parent=1 // pred_fallthru
      _
    %v37 = vld [vmem:[#allocation2] sm:$0xff]
    %v38 = vld [vmem:[#allocation4] sm:$0xff]
    %v39 = vld [vmem:[#allocation4 + $0x8] sm:$0xff]
    %v40 = vld [vmem:[#allocation4 + $0x10] sm:$0xff]
    %v41 = vld [vmem:[#allocation4 + $0x18] sm:$0xff]
    %v42 = vld [vmem:[#allocation4 + $0x20] sm:$0xff]
    %v43 = vld [vmem:[#allocation4 + $0x28] sm:$0xff]
    %v44 = vld [vmem:[#allocation4 + $0x30] sm:$0xff]
    %v45 = vld [vmem:[#allocation4 + $0x38] sm:$0xff]
    %v46 = vld [vmem:[#allocation4 + $0x40] sm:$0xff]
    %v47 = vld [vmem:[#allocation4 + $0x48] sm:$0xff]
    %v48 = vld [vmem:[#allocation4 + $0x50] sm:$0xff]
    %v49 = vld [vmem:[#allocation4 + $0x58] sm:$0xff]
    %v50 = vld [vmem:[#allocation4 + $0x60] sm:$0xff]
    %v51 = vld [vmem:[#allocation4 + $0x68] sm:$0xff]
    %v52 = vld [vmem:[#allocation4 + $0x70] sm:$0xff]
    %v53 = vld [vmem:[#allocation4 + $0x78] sm:$0xff]
    %v54 = vld [vmem:[#allocation4 + $0x80] sm:$0xff]
    %v55 = vld [vmem:[#allocation4 + $0x88] sm:$0xff]
    %v56 = vld [vmem:[#allocation4 + $0x90] sm:$0xff]
    %v57 = vld [vmem:[#allocation4 + $0x98] sm:$0xff]
    %v58 = vld [vmem:[#allocation4 + $0xa0] sm:$0xff]
    %v59 = vld [vmem:[#allocation4 + $0xa8] sm:$0xff]
    %v60 = vld [vmem:[#allocation4 + $0xb0] sm:$0xff]
    %v61 = vld [vmem:[#allocation4 + $0xb8] sm:$0xff]
    %v62 = vld [vmem:[#allocation4 + $0xc0] sm:$0xff]
    %v63 = vld [vmem:[#allocation4 + $0xc8] sm:$0xff]
    %v64 = vld [vmem:[#allocation4 + $0xd0] sm:$0xff]
    %v65 = vld [vmem:[#allocation4 + $0xd8] sm:$0xff]
    %v66 = vld [vmem:[#allocation4 + $0xe0] sm:$0xff]
    %v67 = vld [vmem:[#allocation4 + $0xe8] sm:$0xff]
    %v68 = vld [vmem:[#allocation4 + $0xf0] sm:$0xff]
    %v69 = vld [vmem:[#allocation4 + $0xf8] sm:$0xff]
    %v70 = vld [vmem:[#allocation4 + $0x100] sm:$0xff]
    %v71 = vld [vmem:[#allocation4 + $0x108] sm:$0xff]
    %v72 = vld [vmem:[#allocation4 + $0x110] sm:$0xff]
    %v73 = vld [vmem:[#allocation4 + $0x118] sm:$0xff]
    %v74 = vld [vmem:[#allocation4 + $0x120] sm:$0xff]
    %v75 = vlaneseq
    %v76 = vshrl.u32 %v75, 7
    %v77 = vsub.s32 0, %v76
    %v78 = vrot.slane %v74, %v77
    %vm79 = vcmask 261120
    %v81 = vsel %vm79, %v37, 0
    %83 = vmatprep.subr.mxu0 0.0
    %84 = vmatpush1.msra.mxu0 %v38
    %85 = vmatprep.subr.mxu0 0.0
    %86 = vmatpush1.msra.mxu0 %v39
    %87 = vmatprep.subr.mxu0 0.0
    %88 = vmatpush1.msra.mxu0 %v40
    %89 = vmatprep.subr.mxu0 0.0
    %90 = vmatpush1.msra.mxu0 %v41
    %91 = vmatprep.subr.mxu0 0.0
    %92 = vmatpush1.msra.mxu0 0.0
    %93 = vmatprep.subr.mxu0 0.0
    %94 = vmatpush1.msra.mxu0 0.0
    %95 = vmatprep.subr.mxu0 0.0
    %96 = vmatpush1.msra.mxu0 0.0
    %97 = vmatprep.subr.mxu0 0.0
    %98 = vmatpush1.msra.mxu0 0.0
    %99 = vmatprep.subr.mxu0 0.0
    %100 = vmatpush1.msra.mxu0 0.0
    %101 = vmatprep.subr.mxu0 0.0
    %102 = vmatpush1.msra.mxu0 0.0
    %103 = vmatprep.subr.mxu0 0.0
    %104 = vmatpush1.msra.mxu0 0.0
    %105 = vmatprep.subr.mxu0 0.0
    %106 = vmatpush1.msra.mxu0 0.0
    %107 = vmatprep.subr.mxu0 0.0
    %108 = vmatpush1.msra.mxu0 0.0
    %109 = vmatprep.subr.mxu0 0.0
    %110 = vmatpush1.msra.mxu0 0.0
    %111 = vmatprep.subr.mxu0 0.0
    %112 = vmatpush1.msra.mxu0 0.0
    %113 = vmatprep.subr.mxu0 0.0
    %114 = vmatpush1.msra.mxu0 0.0
    %115 = vmatprep.subr.mxu0 0.0
    %116 = vmatpush1.msra.mxu0 0.0
    %117 = vmatprep.subr.mxu0 0.0
    %118 = vmatpush1.msra.mxu0 0.0
    %119 = vmatprep.subr.mxu0 0.0
    %120 = vmatpush1.msra.mxu0 0.0
    %121 = vmatprep.subr.mxu0 0.0
    %122 = vmatpush1.msra.mxu0 0.0
    %123 = vmatprep.subr.mxu0 0.0
    %124 = vmatpush1.msra.mxu0 0.0
    %125 = vmatprep.subr.mxu0 0.0
    %126 = vmatpush1.msra.mxu0 0.0
    %127 = vmatprep.subr.mxu0 0.0
    %128 = vmatpush1.msra.mxu0 0.0
    %129 = vmatprep.subr.mxu0 0.0
    %130 = vmatpush1.msra.mxu0 0.0
    %131 = vmatprep.subr.mxu0 0.0
    %132 = vmatpush1.msra.mxu0 0.0
    %133 = vmatprep.subr.mxu0 0.0
    %134 = vmatpush1.msra.mxu0 0.0
    %135 = vmatprep.subr.mxu0 0.0
    %136 = vmatpush1.msra.mxu0 0.0
    %137 = vmatprep.subr.mxu0 0.0
    %138 = vmatpush1.msra.mxu0 0.0
    %139 = vmatprep.subr.mxu0 0.0
    %140 = vmatpush1.msra.mxu0 0.0
    %141 = vmatprep.subr.mxu0 0.0
    %142 = vmatpush1.msra.mxu0 0.0
    %143 = vmatprep.subr.mxu0 0.0
    %144 = vmatpush1.msra.mxu0 0.0
    %145 = vmatprep.subr.mxu0 0.0
    %146 = vmatpush1.msra.mxu0 0.0
    %147 = vmatprep.mubr.f32.mxu0 0.0
    %148 = vmatmul.mubr.f32.gmra.mrb[0].mxu0 %v81
    %v149 = vpop.f32.mrb[0].mxu0
    %v150 = vadd.f32 %v78, %v149
    %v151 = vpop.f32.mrb[0].mxu0
    %152 = vdwg.mxu0
    %vm153 = vcmp.gt.f32.partialorder %v150, 0.0
    %v154 = vmul.f32 %v150, 0.01
    %v155 = vsel %vm153, %v150, %v154
    %156 = vadd.xlane.f32.xlu0 %v155
    %v157 = vpop.xlane.xlu0 %156
    %v158 = vmul.f32 %v155, %v155
    %159 = vadd.xlane.f32.xlu0 %v158
    %v160 = vpop.xlane.xlu0 %159
    %v161 = vmul.f32 %v157, 0.01
    %v162 = vmul.f32 %v160, 0.01
    %v163 = vmul.f32 %v161, %v161
    %v164 = vsub.f32 %v162, %v163
    %v165 = vadd.f32 %v164, 1e-05
    %v166 = vrsqrt.pop %v165
    %v167 = vsub.f32 %v155, %v161
    %v168 = vmul.f32 %v167, %v166
    %v169 = vlaneseq
    %v170 = vshrl.u32 %v169, 7
    %v171 = vsub.s32 1, %v170
    %v172 = vrot.slane %v74, %v171
    %v173 = vmul.f32 %v168, %v172
    %v174 = vlaneseq
    %v175 = vshrl.u32 %v174, 7
    %v176 = vsub.s32 2, %v175
    %v177 = vrot.slane %v74, %v176
    %v178 = vadd.f32 %v173, %v177
    %v179 = vlaneseq
    %v180 = vshrl.u32 %v179, 7
    %v181 = vsub.s32 3, %v180
    %v182 = vrot.slane %v74, %v181
    %183 = vmatprep.subr.mxu0 0.0
    %184 = vmatpush1.msra.mxu0 %v42
    %185 = vmatprep.subr.mxu0 0.0
    %186 = vmatpush1.msra.mxu0 %v43
    %187 = vmatprep.subr.mxu0 0.0
    %188 = vmatpush1.msra.mxu0 %v44
    %189 = vmatprep.subr.mxu0 0.0
    %190 = vmatpush1.msra.mxu0 %v45
    %191 = vmatprep.subr.mxu0 0.0
    %192 = vmatpush1.msra.mxu0 %v46
    %193 = vmatprep.subr.mxu0 0.0
    %194 = vmatpush1.msra.mxu0 %v47
    %195 = vmatprep.subr.mxu0 0.0
    %196 = vmatpush1.msra.mxu0 %v48
    %197 = vmatprep.subr.mxu0 0.0
    %198 = vmatpush1.msra.mxu0 %v49
    %199 = vmatprep.subr.mxu0 0.0
    %200 = vmatpush1.msra.mxu0 %v50
    %201 = vmatprep.subr.mxu0 0.0
    %202 = vmatpush1.msra.mxu0 %v51
    %203 = vmatprep.subr.mxu0 0.0
    %204 = vmatpush1.msra.mxu0 %v52
    %205 = vmatprep.subr.mxu0 0.0
    %206 = vmatpush1.msra.mxu0 %v53
    %207 = vmatprep.subr.mxu0 0.0
    %208 = vmatpush1.msra.mxu0 %v54
    %209 = vmatprep.subr.mxu0 0.0
    %210 = vmatpush1.msra.mxu0 %v55
    %211 = vmatprep.subr.mxu0 0.0
    %212 = vmatpush1.msra.mxu0 %v56
    %213 = vmatprep.subr.mxu0 0.0
    %214 = vmatpush1.msra.mxu0 %v57
    %215 = vmatprep.subr.mxu0 0.0
    %216 = vmatpush1.msra.mxu0 0.0
    %217 = vmatprep.subr.mxu0 0.0
    %218 = vmatpush1.msra.mxu0 0.0
    %219 = vmatprep.subr.mxu0 0.0
    %220 = vmatpush1.msra.mxu0 0.0
    %221 = vmatprep.subr.mxu0 0.0
    %222 = vmatpush1.msra.mxu0 0.0
    %223 = vmatprep.subr.mxu0 0.0
    %224 = vmatpush1.msra.mxu0 0.0
    %225 = vmatprep.subr.mxu0 0.0
    %226 = vmatpush1.msra.mxu0 0.0
    %227 = vmatprep.subr.mxu0 0.0
    %228 = vmatpush1.msra.mxu0 0.0
    %229 = vmatprep.subr.mxu0 0.0
    %230 = vmatpush1.msra.mxu0 0.0
    %231 = vmatprep.subr.mxu0 0.0
    %232 = vmatpush1.msra.mxu0 0.0
    %233 = vmatprep.subr.mxu0 0.0
    %234 = vmatpush1.msra.mxu0 0.0
    %235 = vmatprep.subr.mxu0 0.0
    %236 = vmatpush1.msra.mxu0 0.0
    %237 = vmatprep.subr.mxu0 0.0
    %238 = vmatpush1.msra.mxu0 0.0
    %239 = vmatprep.subr.mxu0 0.0
    %240 = vmatpush1.msra.mxu0 0.0
    %241 = vmatprep.subr.mxu0 0.0
    %242 = vmatpush1.msra.mxu0 0.0
    %243 = vmatprep.subr.mxu0 0.0
    %244 = vmatpush1.msra.mxu0 0.0
    %245 = vmatprep.subr.mxu0 0.0
    %246 = vmatpush1.msra.mxu0 0.0
    %247 = vmatprep.mubr.f32.mxu0 0.0
    %248 = vmatmul.mubr.f32.gmra.mrb[0].mxu0 %v178
    %v249 = vpop.f32.mrb[0].mxu0
    %v250 = vadd.f32 %v182, %v249
    %v251 = vpop.f32.mrb[0].mxu0
    %252 = vdwg.mxu0
    %vm253 = vcmp.gt.f32.partialorder %v250, 0.0
    %v254 = vmul.f32 %v250, 0.01
    %v255 = vsel %vm253, %v250, %v254
    %256 = vadd.xlane.f32.xlu0 %v255
    %v257 = vpop.xlane.xlu0 %256
    %v258 = vmul.f32 %v255, %v255
    %259 = vadd.xlane.f32.xlu0 %v258
    %v260 = vpop.xlane.xlu0 %259
    %v261 = vmul.f32 %v257, 0.01
    %v262 = vmul.f32 %v260, 0.01
    %v263 = vmul.f32 %v261, %v261
    %v264 = vsub.f32 %v262, %v263
    %v265 = vadd.f32 %v264, 1e-05
    %v266 = vrsqrt.pop %v265
    %v267 = vsub.f32 %v255, %v261
    %v268 = vmul.f32 %v267, %v266
    %v269 = vlaneseq
    %v270 = vshrl.u32 %v269, 7
    %v271 = vsub.s32 4, %v270
    %v272 = vrot.slane %v74, %v271
    %v273 = vmul.f32 %v268, %v272
    %v274 = vlaneseq
    %v275 = vshrl.u32 %v274, 7
    %v276 = vsub.s32 5, %v275
    %v277 = vrot.slane %v74, %v276
    %v278 = vadd.f32 %v273, %v277
    %v279 = vlaneseq
    %v280 = vshrl.u32 %v279, 7
    %v281 = vsub.s32 6, %v280
    %v282 = vrot.slane %v74, %v281
    %283 = vmatprep.subr.mxu0 0.0
    %284 = vmatpush1.msra.mxu0 %v58
    %285 = vmatprep.subr.mxu0 0.0
    %286 = vmatpush1.msra.mxu0 %v59
    %287 = vmatprep.subr.mxu0 0.0
    %288 = vmatpush1.msra.mxu0 %v60
    %289 = vmatprep.subr.mxu0 0.0
    %290 = vmatpush1.msra.mxu0 %v61
    %291 = vmatprep.subr.mxu0 0.0
    %292 = vmatpush1.msra.mxu0 %v62
    %293 = vmatprep.subr.mxu0 0.0
    %294 = vmatpush1.msra.mxu0 %v63
    %295 = vmatprep.subr.mxu0 0.0
    %296 = vmatpush1.msra.mxu0 %v64
    %297 = vmatprep.subr.mxu0 0.0
    %298 = vmatpush1.msra.mxu0 %v65
    %299 = vmatprep.subr.mxu0 0.0
    %300 = vmatpush1.msra.mxu0 %v66
    %301 = vmatprep.subr.mxu0 0.0
    %302 = vmatpush1.msra.mxu0 %v67
    %303 = vmatprep.subr.mxu0 0.0
    %304 = vmatpush1.msra.mxu0 %v68
    %305 = vmatprep.subr.mxu0 0.0
    %306 = vmatpush1.msra.mxu0 %v69
    %307 = vmatprep.subr.mxu0 0.0
    %308 = vmatpush1.msra.mxu0 %v70
    %309 = vmatprep.subr.mxu0 0.0
    %310 = vmatpush1.msra.mxu0 %v71
    %311 = vmatprep.subr.mxu0 0.0
    %312 = vmatpush1.msra.mxu0 %v72
    %313 = vmatprep.subr.mxu0 0.0
    %314 = vmatpush1.msra.mxu0 %v73
    %315 = vmatprep.subr.mxu0 0.0
    %316 = vmatpush1.msra.mxu0 0.0
    %317 = vmatprep.subr.mxu0 0.0
    %318 = vmatpush1.msra.mxu0 0.0
    %319 = vmatprep.subr.mxu0 0.0
    %320 = vmatpush1.msra.mxu0 0.0
    %321 = vmatprep.subr.mxu0 0.0
    %322 = vmatpush1.msra.mxu0 0.0
    %323 = vmatprep.subr.mxu0 0.0
    %324 = vmatpush1.msra.mxu0 0.0
    %325 = vmatprep.subr.mxu0 0.0
    %326 = vmatpush1.msra.mxu0 0.0
    %327 = vmatprep.subr.mxu0 0.0
    %328 = vmatpush1.msra.mxu0 0.0
    %329 = vmatprep.subr.mxu0 0.0
    %330 = vmatpush1.msra.mxu0 0.0
    %331 = vmatprep.subr.mxu0 0.0
    %332 = vmatpush1.msra.mxu0 0.0
    %333 = vmatprep.subr.mxu0 0.0
    %334 = vmatpush1.msra.mxu0 0.0
    %335 = vmatprep.subr.mxu0 0.0
    %336 = vmatpush1.msra.mxu0 0.0
    %337 = vmatprep.subr.mxu0 0.0
    %338 = vmatpush1.msra.mxu0 0.0
    %339 = vmatprep.subr.mxu0 0.0
    %340 = vmatpush1.msra.mxu0 0.0
    %341 = vmatprep.subr.mxu0 0.0
    %342 = vmatpush1.msra.mxu0 0.0
    %343 = vmatprep.subr.mxu0 0.0
    %344 = vmatpush1.msra.mxu0 0.0
    %345 = vmatprep.subr.mxu0 0.0
    %346 = vmatpush1.msra.mxu0 0.0
    %347 = vmatprep.mubr.f32.mxu0 0.0
    %348 = vmatmul.mubr.f32.gmra.mrb[0].mxu0 %v278
    %v349 = vpop.f32.mrb[0].mxu0
    %v350 = vadd.f32 %v282, %v349
    %v351 = vpop.f32.mrb[0].mxu0
    %352 = vdwg.mxu0
    %353 = vmax.xlane.f32.xlu0 %v350
    %v354 = vpop.xlane.xlu0 %353
    %v355 = vsub.f32 %v350, %v354
    %v356 = vmul.f32 %v355, 1.442695
    %v357 = vpow.pop %v356
    %358 = vadd.xlane.f32.xlu0 %v357
    %v359 = vpop.xlane.xlu0 %358
    %v360 = vlog2.pop %v359
    %v361 = vmul.f32 %v360, 0.6931472
    %v362 = vadd.f32 %v354, %v361
    %363 = vst [vmem:[%s2] sm:$0xff] %v350
    %v364 = vsub.f32 %v350, %v362
    %s365 = scalar_lea.vmem %s2, 8
    %366 = vst [vmem:[%s365] sm:$0xff] %v364
    // Predicated region
    $region18: #{actor_nw_forward.1} parent=1 // pred_check
      _
    $region19: #{actor_nw_forward.1} parent=1 // pred_check_branch
      %368 = sbr.rel (0) target = $region21
    $region20: #{actor_nw_forward.1} parent=1 // pred_region
      _
    $region21: #{actor_nw_forward.1} parent=1 // pred_fallthru
      _
    // Predicated region
    $region22: #{actor_nw_forward.1} parent=1 // pred_check
      _
    $region23: #{actor_nw_forward.1} parent=1 // pred_check_branch
      %370 = sbr.rel (0) target = $region25
    $region24: #{actor_nw_forward.1} parent=1 // pred_region
      _
    $region25: #{actor_nw_forward.1} parent=1 // pred_fallthru
      _
    %371 = vsyncpa [#allocation3], 1
    %372 = vsyncpa [#allocation5], 1

</llo_original>
